<compile_context>
chip_gen: v7x
topology: tpu7x:2x2x1
jax: 0.10.0
libtpu: 0.0.40
codegen_flags: <defaults>
</compile_context>

<pallas_src>
import math

import jax
import jax.numpy as jnp
from jax.experimental import pallas as pl
from jax.experimental.pallas import tpu as pltpu


def _round_up(x, m):
    return (x + m - 1) // m * m


def _tpu_config():
    """Per-generation (tile VMEM budget, vmem_limit_bytes, query-tile cap)."""
    kind = ""
    try:
        kind = jax.devices()[0].device_kind.lower()
    except Exception:
        pass
    if "v7" in kind:
        # Only 64 MiB physical VMEM, shared with compiler temporaries.
        return 24 << 20, 44 << 20, 512
    if "v6" in kind:
        return 48 << 20, 96 << 20, 512
    if "v5e" in kind or "v5 lite" in kind or "v5lite" in kind:
        # 4x128^2 MXU saturates at small M: cap tq, spend VMEM on batch tiles.
        return 48 << 20, 96 << 20, 256
    # Unknown generation: conservative defaults (safe even at 64 MiB physical).
    return 32 << 20, 64 << 20, 512


def _make_kernel(true_d, true_lh, padded_lh):
    inv_sqrt_d = 1.0 / math.sqrt(true_d)

    def kernel(prem_ref, hyp_ref, pmask_ref, hmask_ref, out_ref):
        # Per-grid-step views:
        #   prem_ref : (bt, tq, Dp)   hyp_ref  : (bt, Lhp, Dp)
        #   pmask_ref: (bt, tq, 1)    hmask_ref: (bt, 1, Lhp)
        #   out_ref  : (bt, tq, Dp)
        p = prem_ref[...]                                # input dtype for the MXU
        h = hyp_ref[...]
        pm = pmask_ref[...].astype(jnp.float32)          # (bt, tq, 1)
        hm = hmask_ref[...].astype(jnp.float32)          # (bt, 1, Lhp)

        # Scaled dot-product similarity; f32 accumulation on the MXU.
        # NOTE: Mosaic feeds this A·Bᵀ contraction natively; if MLIR ever shows
        # a per-q-step vxpose of the resident hyp tile, hoist it into a scratch
        # under @pl.when(pl.program_id(1) == 0).
        sim = jnp.einsum("bpd,bhd->bph", p, h,
                         preferred_element_type=jnp.float32)
        # Fold 1/sqrt(d) into the small mask vector: (sim/sqrt(d))*hm ==
        # sim*(hm/sqrt(d)) exactly for 0/1 masks; saves a full (bt,tq,Lh) pass.
        masked = sim * (hm * inv_sqrt_d)

        if padded_lh != true_lh:
            # Exclude synthetic Lh-padding columns from the max / denominators
            # so they do not perturb the original masked-softmax semantics.
            col = jax.lax.broadcasted_iota(jnp.int32, (1, 1, padded_lh), 2)
            masked = jnp.where(col < true_lh, masked, -jnp.inf)

        # Fused ESIM masked_softmax + renorm:
        #   softmax(masked)*hm / (sum(softmax(masked)*hm) + 1e-13)
        #     == e*hm / (s2 + 1e-13*s1)   with e = exp(masked - max).
        m = jnp.max(masked, axis=-1, keepdims=True)
        e = jnp.exp(masked - m)                          # padded cols -> exp(-inf)=0
        eh = e * hm
        s1 = jnp.sum(e, axis=-1, keepdims=True)
        s2 = jnp.sum(eh, axis=-1, keepdims=True)
        attn = eh * pl.reciprocal(s2 + 1e-13 * s1)       # exact reciprocal

        # Weighted sum of hypothesis vectors (MXU, input dtype), then zero
        # padded premise rows.
        attended = jnp.einsum("bph,bhd->bpd", attn.astype(h.dtype), h,
                              preferred_element_type=jnp.float32)
        out_ref[...] = (attended * pm).astype(out_ref.dtype)

    return kernel


def _pick_tiles(B, Lp, Lhp, Dp, itemsize, budget, tq_cap):
    """Choose (batch_tile, query_tile) against the per-generation VMEM budget."""
    tq = Lp if Lp <= tq_cap else tq_cap                  # tq_cap is 8/128-aligned

    def footprint(bt, tq_):
        # Double-buffered pipeline blocks: premise, output, hypothesis, masks.
        io = 2 * bt * (2 * tq_ * Dp + Lhp * Dp) * itemsize
        io += 2 * bt * (tq_ + Lhp) * itemsize
        # ~4 concurrent f32 (bt,tq,Lh) softmax temporaries (sim/masked/e/eh),
        # the low-precision attn copy fed to the MXU, and f32 `attended`.
        tmp = 4 * bt * tq_ * Lhp * 4
        tmp += bt * tq_ * Lhp * itemsize
        tmp += bt * tq_ * Dp * 4
        return io + tmp

    # Shrink the query tile (multiples of 8) only if one batch element alone
    # blows the budget (very long Lh).
    while tq > 8 and footprint(1, tq) > budget:
        tq = max(8, _round_up(tq // 2, 8))

    bt = 1
    while bt < B and footprint(bt * 2, tq) <= budget:
        bt *= 2
    return min(bt, B), tq


def uni_attention(premise_batch, premise_mask, hypothesis_batch, hypothesis_mask):
    """premise_batch: (B, Lp, D); premise_mask: (B, Lp);
    hypothesis_batch: (B, Lh, D); hypothesis_mask: (B, Lh).
    Returns attended premises: (B, Lp, D) in the input dtype."""
    B, Lp, D = premise_batch.shape
    _, Lh, _ = hypothesis_batch.shape
    in_dtype = premise_batch.dtype
    itemsize = jnp.dtype(in_dtype).itemsize

    budget, vmem_limit, tq_cap = _tpu_config()

    # Lane-dense padding: round D / Lh up to multiples of 128 when the extra
    # HBM traffic stays bounded (<= 2x). Zero D-padding is exact; Lh padding is
    # excluded inside the kernel.
    Dp = _round_up(D, 128) if _round_up(D, 128) <= 2 * D else D
    Lhp = _round_up(Lh, 128) if _round_up(Lh, 128) <= 2 * Lh else Lh

    prem = premise_batch
    hyp = hypothesis_batch
    if Dp != D:
        prem = jnp.pad(prem, ((0, 0), (0, 0), (0, Dp - D)))
        hyp = jnp.pad(hyp, ((0, 0), (0, 0), (0, Dp - D)))
    if Lhp != Lh:
        hyp = jnp.pad(hyp, ((0, 0), (0, Lhp - Lh), (0, 0)))

    # Masks in the input dtype (0/1 is exact in bf16); shaped so trailing block
    # dims either equal the full array dim or are (8,128)-aligned.
    pmask3 = premise_mask.astype(in_dtype).reshape(B, Lp, 1)
    hm2 = hypothesis_mask.astype(in_dtype)
    if Lhp != Lh:
        hm2 = jnp.pad(hm2, ((0, 0), (0, Lhp - Lh)))
    hmask3 = hm2.reshape(B, 1, Lhp)

    bt, tq = _pick_tiles(B, Lp, Lhp, Dp, itemsize, budget, tq_cap)
    grid = (pl.cdiv(B, bt), pl.cdiv(Lp, tq))

    cost = pl.CostEstimate(
        flops=4 * B * Lp * Lhp * Dp,                     # two batched matmuls
        transcendentals=B * Lp * Lhp,                    # softmax exp
        bytes_accessed=(prem.size + hyp.size + B * Lp * Dp) * itemsize
        + (pmask3.size + hmask3.size) * itemsize,
    )

    out = pl.pallas_call(
        _make_kernel(D, Lh, Lhp),
        out_shape=jax.ShapeDtypeStruct((B, Lp, Dp), in_dtype),
        grid_spec=pltpu.PrefetchScalarGridSpec(
            num_scalar_prefetch=0,
            grid=grid,
            in_specs=[
                pl.BlockSpec((bt, tq, Dp), lambda b, q: (b, q, 0)),   # premise tile
                pl.BlockSpec((bt, Lhp, Dp), lambda b, q: (b, 0, 0)),  # hyp resident over q
                pl.BlockSpec((bt, tq, 1), lambda b, q: (b, q, 0)),    # premise mask
                pl.BlockSpec((bt, 1, Lhp), lambda b, q: (b, 0, 0)),   # hypothesis mask
            ],
            out_specs=pl.BlockSpec((bt, tq, Dp), lambda b, q: (b, q, 0)),
        ),
        compiler_params=pltpu.CompilerParams(
            # Batch axis parallel (megacore), query axis arbitrary so a single
            # core walks all q-tiles and keeps hyp VMEM-resident.
            dimension_semantics=("parallel", "arbitrary"),
            vmem_limit_bytes=vmem_limit,
        ),
        cost_estimate=cost,
    )(prem, hyp, pmask3, hmask3)

    if Dp != D:
        out = out[:, :, :D]
    return out


def _reference(premise_batch, premise_mask, hypothesis_batch, hypothesis_mask):
    """Pure-JAX reference mirroring the PyTorch code path (dropout=0)."""
    d = hypothesis_batch.shape[-1]
    sim = jnp.einsum("bpd,bhd->bph", premise_batch, hypothesis_batch) / math.sqrt(d)
    hm = hypothesis_mask.astype(jnp.float32)[:, None, :]
    masked = sim * hm
    soft = jax.nn.softmax(masked, axis=-1) * hm
    attn = soft / (jnp.sum(soft, axis=-1, keepdims=True) + 1e-13)
    weighted = jnp.einsum("bph,bhd->bpd", attn, hypothesis_batch)
    pm = premise_mask.astype(jnp.float32)[:, :, None]
    return weighted * pm


if __name__ == "__main__":
    # TODO(synk): nn.Dropout(dropout) with dropout=0 is the identity in eval
    # mode; non-zero training-time dropout on the similarity matrix is not
    # implemented here.
    key = jax.random.PRNGKey(0)

    # Case 1: small shapes, un-padded code path.
    B, Lp, Lh, D = 2, 8, 8, 32
    k1, k2 = jax.random.split(key)
    prem = jax.random.normal(k1, (B, Lp, D), dtype=jnp.float32)
    hyp = jax.random.normal(k2, (B, Lh, D), dtype=jnp.float32)
    prem_lens = jnp.array([6, 8])
    hyp_lens = jnp.array([5, 7])
    pmask = (jnp.arange(Lp)[None, :] < prem_lens[:, None]).astype(jnp.float32)
    hmask = (jnp.arange(Lh)[None, :] < hyp_lens[:, None]).astype(jnp.float32)

    out = jax.block_until_ready(uni_attention(prem, pmask, hyp, hmask))
    ref = _reference(prem, pmask, hyp, hmask)
    assert out.shape == (B, Lp, D)
    assert jnp.allclose(out, ref, atol=1e-5, rtol=1e-5), "mismatch vs reference (case 1)"

    # Case 2: exercises the lane-dense padding path (D -> 256, Lh -> 128).
    B, Lp, Lh, D = 3, 24, 100, 200
    k3, k4 = jax.random.split(k1)
    prem = jax.random.normal(k3, (B, Lp, D), dtype=jnp.float32)
    hyp = jax.random.normal(k4, (B, Lh, D), dtype=jnp.float32)
    prem_lens = jnp.array([20, 24, 11])
    hyp_lens = jnp.array([93, 100, 57])
    pmask = (jnp.arange(Lp)[None, :] < prem_lens[:, None]).astype(jnp.float32)
    hmask = (jnp.arange(Lh)[None, :] < hyp_lens[:, None]).astype(jnp.float32)

    out = jax.block_until_ready(uni_attention(prem, pmask, hyp, hmask))
    ref = _reference(prem, pmask, hyp, hmask)
    assert out.shape == (B, Lp, D)
    assert jnp.allclose(out, ref, atol=1e-4, rtol=1e-4), "mismatch vs reference (case 2)"

    print("KERNEL_OK")
</pallas_src>

<mosaic_0001>
module attributes {stable_mosaic.version = 11 : i64} {
  func.func @kernel(%arg0: i32, %arg1: i32, %arg2: memref<2x8x32xf32, #tpu.memory_space<vmem>>, %arg3: memref<2x8x32xf32, #tpu.memory_space<vmem>>, %arg4: memref<2x8x1xf32, #tpu.memory_space<vmem>>, %arg5: memref<2x1x8xf32, #tpu.memory_space<vmem>>, %arg6: memref<2x8x32xf32, #tpu.memory_space<vmem>>) attributes {dimension_semantics = [#tpu.dimension_semantics<parallel>, #tpu.dimension_semantics<arbitrary>], iteration_bounds = array<i64: 1, 1>, scalar_prefetch = 0 : i64, scratch_operands = 0 : i64, tpu.core_type = #tpu.core_type<tc>, window_params = [{transform_indices = @transform_0, window_bounds = array<i64: 2, 8, 32>}, {transform_indices = @transform_1, window_bounds = array<i64: 2, 8, 32>}, {transform_indices = @transform_2, window_bounds = array<i64: 2, 8, 1>}, {transform_indices = @transform_3, window_bounds = array<i64: 2, 1, 8>}, {transform_indices = @transform_4, window_bounds = array<i64: 2, 8, 32>}]} {
    %c0 = arith.constant 0 : index
    %c0_0 = arith.constant 0 : index
    %c0_1 = arith.constant 0 : index
    %0 = vector.load %arg2[%c0, %c0_0, %c0_1] : memref<2x8x32xf32, #tpu.memory_space<vmem>>, vector<2x8x32xf32>
    %c0_2 = arith.constant 0 : index
    %c0_3 = arith.constant 0 : index
    %c0_4 = arith.constant 0 : index
    %1 = vector.load %arg3[%c0_2, %c0_3, %c0_4] : memref<2x8x32xf32, #tpu.memory_space<vmem>>, vector<2x8x32xf32>
    %c0_5 = arith.constant 0 : index
    %c0_6 = arith.constant 0 : index
    %c0_7 = arith.constant 0 : index
    %2 = vector.load %arg4[%c0_5, %c0_6, %c0_7] : memref<2x8x1xf32, #tpu.memory_space<vmem>>, vector<2x8x1xf32>
    %c0_8 = arith.constant 0 : index
    %c0_9 = arith.constant 0 : index
    %c0_10 = arith.constant 0 : index
    %3 = vector.load %arg5[%c0_8, %c0_9, %c0_10] : memref<2x1x8xf32, #tpu.memory_space<vmem>>, vector<2x1x8xf32>
    "tpu.trace_start"() <{level = 10 : i32, message = "bpd,bhd->bph"}> : () -> ()
    %cst = arith.constant dense<0.000000e+00> : vector<2x8x8xf32>
    %4 = tpu.matmul %0, %1, %cst {dimension_numbers = #tpu.dot_dimension_numbers<[2], [2], [1], [1], [0, 0, 0, 1, 1, 1], [0], [0]>} : vector<2x8x32xf32>, vector<2x8x32xf32>, vector<2x8x8xf32> -> vector<2x8x8xf32>
    "tpu.trace_stop"() : () -> ()
    %cst_11 = arith.constant 0.176776692 : f32
    %5 = vector.broadcast %cst_11 : f32 to vector<2x1x8xf32>
    %6 = arith.mulf %3, %5 : vector<2x1x8xf32>
    %7 = vector.broadcast %6 : vector<2x1x8xf32> to vector<2x8x8xf32>
    %8 = arith.mulf %4, %7 : vector<2x8x8xf32>
    %cst_12 = arith.constant dense<0xFF800000> : vector<2x8xf32>
    %9 = vector.multi_reduction <maximumf>, %8, %cst_12 [2] : vector<2x8x8xf32> to vector<2x8xf32>
    %10 = vector.shape_cast %9 : vector<2x8xf32> to vector<2x8x1xf32>
    %11 = vector.broadcast %10 : vector<2x8x1xf32> to vector<2x8x8xf32>
    %12 = arith.subf %8, %11 : vector<2x8x8xf32>
    %13 = math.exp %12 : vector<2x8x8xf32>
    %14 = vector.broadcast %3 : vector<2x1x8xf32> to vector<2x8x8xf32>
    %15 = arith.mulf %13, %14 : vector<2x8x8xf32>
    %cst_13 = arith.constant dense<0.000000e+00> : vector<2x8xf32>
    %16 = vector.multi_reduction <add>, %13, %cst_13 [2] : vector<2x8x8xf32> to vector<2x8xf32>
    %17 = vector.shape_cast %16 : vector<2x8xf32> to vector<2x8x1xf32>
    %cst_14 = arith.constant dense<0.000000e+00> : vector<2x8xf32>
    %18 = vector.multi_reduction <add>, %15, %cst_14 [2] : vector<2x8x8xf32> to vector<2x8xf32>
    %19 = vector.shape_cast %18 : vector<2x8xf32> to vector<2x8x1xf32>
    %cst_15 = arith.constant 9.99999982E-14 : f32
    %20 = vector.broadcast %cst_15 : f32 to vector<2x8x1xf32>
    %21 = arith.mulf %20, %17 : vector<2x8x1xf32>
    %22 = arith.addf %19, %21 : vector<2x8x1xf32>
    %23 = tpu.reciprocal %22 : vector<2x8x1xf32> -> vector<2x8x1xf32>
    %24 = vector.broadcast %23 : vector<2x8x1xf32> to vector<2x8x8xf32>
    %25 = arith.mulf %15, %24 : vector<2x8x8xf32>
    "tpu.trace_start"() <{level = 10 : i32, message = "bph,bhd->bpd"}> : () -> ()
    %cst_16 = arith.constant dense<0.000000e+00> : vector<2x8x32xf32>
    %26 = tpu.matmul %25, %1, %cst_16 {dimension_numbers = #tpu.dot_dimension_numbers<[2], [1], [1], [2], [0, 0, 0, 1, 1, 2], [0], [0]>} : vector<2x8x8xf32>, vector<2x8x32xf32>, vector<2x8x32xf32> -> vector<2x8x32xf32>
    "tpu.trace_stop"() : () -> ()
    %27 = vector.broadcast %2 : vector<2x8x1xf32> to vector<2x8x32xf32>
    %28 = arith.mulf %26, %27 : vector<2x8x32xf32>
    %c0_17 = arith.constant 0 : index
    %c0_18 = arith.constant 0 : index
    %c0_19 = arith.constant 0 : index
    %29 = vector.load %arg6[%c0_17, %c0_18, %c0_19] : memref<2x8x32xf32, #tpu.memory_space<vmem>>, vector<2x8x32xf32>
    tpu.vector_store %arg6[%c0_17, %c0_18, %c0_19], %28 {strides = array<i32>} : memref<2x8x32xf32, #tpu.memory_space<vmem>>, vector<2x8x32xf32>,
    return
  }
  func.func @transform_0(%arg0: i32, %arg1: i32) -> (i32, i32, i32) {
    %c0_i32 = arith.constant 0 : i32
    %c0_i32_0 = arith.constant 0 : i32
    return %arg0, %arg1, %c0_i32 : i32, i32, i32
  }
  func.func @transform_1(%arg0: i32, %arg1: i32) -> (i32, i32, i32) {
    %c0_i32 = arith.constant 0 : i32
    %c0_i32_0 = arith.constant 0 : i32
    %c0_i32_1 = arith.constant 0 : i32
    return %arg0, %c0_i32, %c0_i32_0 : i32, i32, i32
  }
  func.func @transform_2(%arg0: i32, %arg1: i32) -> (i32, i32, i32) {
    %c0_i32 = arith.constant 0 : i32
    %c0_i32_0 = arith.constant 0 : i32
    return %arg0, %arg1, %c0_i32 : i32, i32, i32
  }
  func.func @transform_3(%arg0: i32, %arg1: i32) -> (i32, i32, i32) {
    %c0_i32 = arith.constant 0 : i32
    %c0_i32_0 = arith.constant 0 : i32
    %c0_i32_1 = arith.constant 0 : i32
    return %arg0, %c0_i32, %c0_i32_0 : i32, i32, i32
  }
  func.func @transform_4(%arg0: i32, %arg1: i32) -> (i32, i32, i32) {
    %c0_i32 = arith.constant 0 : i32
    %c0_i32_0 = arith.constant 0 : i32
    return %arg0, %arg1, %c0_i32 : i32, i32, i32
  }
}

</mosaic_0001>

<llo_original>
// kernel: tpu_custom_call.1
$region0: #{tpu_custom_call.1}
  #allocation0 [shape = 'u32[]', space=smem, size = 0x4, offset = 0x4, fixed_abs, tag = 'smem constant byte address 0x4 - core index']
  #allocation1 [shape = 'u32[144,128]{1,0:T(1,128)}', space=vmem, size = 0x12000, scoped, tag = 'internal scratch']
  %s0 = inlined_call_operand.hbm [shape: f32[2,8,32], index: 0, kind: input, shape index: {}]
  %s1 = inlined_call_operand.hbm [shape: f32[2,8,32], index: 1, kind: input, shape index: {}]
  %s2 = inlined_call_operand.hbm [shape: f32[2,8,1], index: 2, kind: input, shape index: {}]
  %s3 = inlined_call_operand.hbm [shape: f32[2,1,8], index: 3, kind: input, shape index: {}]
  %s4 = inlined_call_operand.hbm [shape: f32[2,8,32], index: 4, kind: output, shape index: {}]
  %s5 = sld [smem:[#allocation0]]
  $region42: #{tpu_custom_call.1} parent=0
    _
  %s7 = ssub.s32 1, %s5
  %s8 = scalar_select 0, %s7, %s5
  $region1: #{tpu_custom_call.1} parent=0
    #allocation2 [shape = 'u8[8192]{0}', space=vmem, size = 0x2000, scoped, tag = 'input window, operand 0, single buffered']
    #allocation3 [shape = 's32[1]{0}', space=sflag, size = 0x4, scoped, tag = 'scoped memory for tpu_custom_call.1']
    #allocation4 [shape = 's32[1]{0}', space=sflag, size = 0x4, scoped, tag = 'scoped memory for tpu_custom_call.1']
    #allocation5 [shape = 'u8[8192]{0}', space=vmem, size = 0x2000, scoped, tag = 'input window, operand 1, single buffered']
    #allocation6 [shape = 's32[1]{0}', space=sflag, size = 0x4, scoped, tag = 'scoped memory for tpu_custom_call.1']
    #allocation7 [shape = 'u8[8192]{0}', space=vmem, size = 0x2000, scoped, tag = 'input window, operand 2, single buffered']
    #allocation8 [shape = 'u8[1024]{0}', space=vmem, size = 0x400, scoped, tag = 'input window, operand 3, single buffered']
    #allocation9 [shape = 's32[1]{0}', space=sflag, size = 0x4, scoped, tag = 'scoped memory for tpu_custom_call.1']
    #allocation10 [shape = 'u8[8192]{0}', space=vmem, size = 0x2000, scoped, tag = 'output window, operand 0, single buffered']
    %9 = vsyncpa [#allocation3], 0
    %10 = vsyncpa [#allocation6], 0
    %11 = vsyncpa [#allocation9], 0
    %12 = vsyncpa [#allocation4], 0
    // Predicated region
    $region2: #{tpu_custom_call.1} parent=1 // pred_check
      _
    $region3: #{tpu_custom_call.1} parent=1 // pred_check_branch
      %14 = sbr.rel (0) target = $region5
    $region4: #{tpu_custom_call.1} parent=1 // pred_region
      %s16 = ssub.s32 256, 256
      %17 = vsyncadd [#allocation3], %s16
      %s18 = sshll.u32 [#allocation2], 4
      %s19 = int_to_ptr.vmem [resolvable:$true] %s18
      %24 = dma.hbm_to_vmem [thread:$0]  %s0, 256, %s19, [#allocation3], 128, 128, 8
    $region5: #{tpu_custom_call.1} parent=1 // pred_fallthru
      _
    // Predicated region
    $region6: #{tpu_custom_call.1} parent=1 // pred_check
      _
    $region7: #{tpu_custom_call.1} parent=1 // pred_check_branch
      %26 = sbr.rel (0) target = $region9
    $region8: #{tpu_custom_call.1} parent=1 // pred_region
      %s28 = ssub.s32 256, 256
      %29 = vsyncadd [#allocation6], %s28
      %s30 = sshll.u32 [#allocation5], 4
      %s31 = int_to_ptr.vmem [resolvable:$true] %s30
      %36 = dma.hbm_to_vmem [thread:$0]  %s1, 256, %s31, [#allocation6], 128, 128, 8
    $region9: #{tpu_custom_call.1} parent=1 // pred_fallthru
      _
    // Predicated region
    $region10: #{tpu_custom_call.1} parent=1 // pred_check
      _
    $region11: #{tpu_custom_call.1} parent=1 // pred_check_branch
      %38 = sbr.rel (0) target = $region13
    $region12: #{tpu_custom_call.1} parent=1 // pred_region
      %s40 = ssub.s32 256, 256
      %41 = vsyncadd [#allocation6], %s40
      %s42 = sshll.u32 [#allocation7], 4
      %s43 = int_to_ptr.vmem [resolvable:$true] %s42
      %48 = dma.hbm_to_vmem [thread:$0]  %s2, 256, %s43, [#allocation6], 128, 128, 8
    $region13: #{tpu_custom_call.1} parent=1 // pred_fallthru
      _
    // Predicated region
    $region14: #{tpu_custom_call.1} parent=1 // pred_check
      _
    $region15: #{tpu_custom_call.1} parent=1 // pred_check_branch
      %50 = sbr.rel (0) target = $region17
    $region16: #{tpu_custom_call.1} parent=1 // pred_region
      %s52 = ssub.s32 32, 32
      %53 = vsyncadd [#allocation9], %s52
      %s54 = sshll.u32 [#allocation8], 4
      %s55 = int_to_ptr.vmem [resolvable:$true] %s54
      %60 = dma.hbm_to_vmem [thread:$0]  %s3, 32, %s55, [#allocation9], 16, 16, 1
    $region17: #{tpu_custom_call.1} parent=1 // pred_fallthru
      _
    // Predicated region
    $region18: #{tpu_custom_call.1} parent=1 // pred_check
      _
    $region19: #{tpu_custom_call.1} parent=1 // pred_check_branch
      %62 = sbr.rel (0) target = $region21
    $region20: #{tpu_custom_call.1} parent=1 // pred_region
      %63 = dma.done [#allocation3], 256
    $region21: #{tpu_custom_call.1} parent=1 // pred_fallthru
      _
    // Predicated region
    $region22: #{tpu_custom_call.1} parent=1 // pred_check
      _
    $region23: #{tpu_custom_call.1} parent=1 // pred_check_branch
      %65 = sbr.rel (0) target = $region25
    $region24: #{tpu_custom_call.1} parent=1 // pred_region
      %66 = dma.done [#allocation6], 256
    $region25: #{tpu_custom_call.1} parent=1 // pred_fallthru
      _
    // Predicated region
    $region26: #{tpu_custom_call.1} parent=1 // pred_check
      _
    $region27: #{tpu_custom_call.1} parent=1 // pred_check_branch
      %68 = sbr.rel (0) target = $region29
    $region28: #{tpu_custom_call.1} parent=1 // pred_region
      %69 = dma.done [#allocation6], 256
    $region29: #{tpu_custom_call.1} parent=1 // pred_fallthru
      _
    // Predicated region
    $region30: #{tpu_custom_call.1} parent=1 // pred_check
      _
    $region31: #{tpu_custom_call.1} parent=1 // pred_check_branch
      %71 = sbr.rel (0) target = $region33
    $region32: #{tpu_custom_call.1} parent=1 // pred_region
      %72 = dma.done [#allocation9], 32
    $region33: #{tpu_custom_call.1} parent=1 // pred_fallthru
      _
    %v73 = vld [vmem:[#allocation2] sm:$0xff]
    %v74 = vld [vmem:[#allocation2 + $0x8] sm:$0xff]
    %v75 = vld [vmem:[#allocation5] sm:$0xff]
    %v76 = vld [vmem:[#allocation5 + $0x8] sm:$0xff]
    %v77 = vld [vmem:[#allocation7] sm:$0xff]
    %v78 = vld [vmem:[#allocation7 + $0x8] sm:$0xff]
    %v79 = vld [vmem:[#allocation8] sm:$0x1]
    %v80 = vld [vmem:[#allocation8 + $0x1] sm:$0x1]
    %vm81 = vcmask 261120
    %v83 = vsel %vm81, %v73, 0
    %v86 = vsel %vm81, %v75, 0
    %88 = vmatprep.subr.mxu0 0.0
    %89 = vmatpush1.xpose.msra.mxu0 %v86
    %90 = vmatprep.subr.mxu0 0.0
    %91 = vmatpush1.xpose.msra.mxu0 0.0
    %92 = vmatprep.subr.mxu0 0.0
    %93 = vmatpush1.xpose.msra.mxu0 0.0
    %94 = vmatprep.subr.mxu0 0.0
    %95 = vmatpush1.xpose.msra.mxu0 0.0
    %96 = vmatprep.subr.mxu0 0.0
    %97 = vmatpush1.xpose.msra.mxu0 0.0
    %98 = vmatprep.subr.mxu0 0.0
    %99 = vmatpush1.xpose.msra.mxu0 0.0
    %100 = vmatprep.subr.mxu0 0.0
    %101 = vmatpush1.xpose.msra.mxu0 0.0
    %102 = vmatprep.subr.mxu0 0.0
    %103 = vmatpush1.xpose.msra.mxu0 0.0
    %104 = vmatprep.subr.mxu0 0.0
    %105 = vmatpush1.xpose.msra.mxu0 0.0
    %106 = vmatprep.subr.mxu0 0.0
    %107 = vmatpush1.xpose.msra.mxu0 0.0
    %108 = vmatprep.subr.mxu0 0.0
    %109 = vmatpush1.xpose.msra.mxu0 0.0
    %110 = vmatprep.subr.mxu0 0.0
    %111 = vmatpush1.xpose.msra.mxu0 0.0
    %112 = vmatprep.subr.mxu0 0.0
    %113 = vmatpush1.xpose.msra.mxu0 0.0
    %114 = vmatprep.subr.mxu0 0.0
    %115 = vmatpush1.xpose.msra.mxu0 0.0
    %116 = vmatprep.subr.mxu0 0.0
    %117 = vmatpush1.xpose.msra.mxu0 0.0
    %118 = vmatprep.subr.mxu0 0.0
    %119 = vmatpush1.xpose.msra.mxu0 0.0
    %120 = vmatprep.subr.mxu0 0.0
    %121 = vmatpush1.xpose.msra.mxu0 0.0
    %122 = vmatprep.subr.mxu0 0.0
    %123 = vmatpush1.xpose.msra.mxu0 0.0
    %124 = vmatprep.subr.mxu0 0.0
    %125 = vmatpush1.xpose.msra.mxu0 0.0
    %126 = vmatprep.subr.mxu0 0.0
    %127 = vmatpush1.xpose.msra.mxu0 0.0
    %128 = vmatprep.subr.mxu0 0.0
    %129 = vmatpush1.xpose.msra.mxu0 0.0
    %130 = vmatprep.subr.mxu0 0.0
    %131 = vmatpush1.xpose.msra.mxu0 0.0
    %132 = vmatprep.subr.mxu0 0.0
    %133 = vmatpush1.xpose.msra.mxu0 0.0
    %134 = vmatprep.subr.mxu0 0.0
    %135 = vmatpush1.xpose.msra.mxu0 0.0
    %136 = vmatprep.subr.mxu0 0.0
    %137 = vmatpush1.xpose.msra.mxu0 0.0
    %138 = vmatprep.subr.mxu0 0.0
    %139 = vmatpush1.xpose.msra.mxu0 0.0
    %140 = vmatprep.subr.mxu0 0.0
    %141 = vmatpush1.xpose.msra.mxu0 0.0
    %142 = vmatprep.subr.mxu0 0.0
    %143 = vmatpush1.xpose.msra.mxu0 0.0
    %144 = vmatprep.subr.mxu0 0.0
    %145 = vmatpush1.xpose.msra.mxu0 0.0
    %146 = vmatprep.subr.mxu0 0.0
    %147 = vmatpush1.xpose.msra.mxu0 0.0
    %148 = vmatprep.subr.mxu0 0.0
    %149 = vmatpush1.xpose.msra.mxu0 0.0
    %150 = vmatprep.subr.mxu0 0.0
    %151 = vmatpush1.xpose.msra.mxu0 0.0
    %152 = vmatprep.mubr.f32.mxu0 0.0
    %153 = vmatmul.mubr.f32.gmra.mrb[0].mxu0 %v83
    %v154 = vpop.f32.mrb[0].mxu0
    %v155 = vadd.f32 0.0, %v154
    %v156 = vpop.f32.mrb[0].mxu0
    %157 = vdwg.mxu0
    %v159 = vsel %vm81, %v74, 0
    %v162 = vsel %vm81, %v76, 0
    %164 = vmatprep.subr.mxu0 0.0
    %165 = vmatpush1.xpose.msra.mxu0 %v162
    %166 = vmatprep.subr.mxu0 0.0
    %167 = vmatpush1.xpose.msra.mxu0 0.0
    %168 = vmatprep.subr.mxu0 0.0
    %169 = vmatpush1.xpose.msra.mxu0 0.0
    %170 = vmatprep.subr.mxu0 0.0
    %171 = vmatpush1.xpose.msra.mxu0 0.0
    %172 = vmatprep.subr.mxu0 0.0
    %173 = vmatpush1.xpose.msra.mxu0 0.0
    %174 = vmatprep.subr.mxu0 0.0
    %175 = vmatpush1.xpose.msra.mxu0 0.0
    %176 = vmatprep.subr.mxu0 0.0
    %177 = vmatpush1.xpose.msra.mxu0 0.0
    %178 = vmatprep.subr.mxu0 0.0
    %179 = vmatpush1.xpose.msra.mxu0 0.0
    %180 = vmatprep.subr.mxu0 0.0
    %181 = vmatpush1.xpose.msra.mxu0 0.0
    %182 = vmatprep.subr.mxu0 0.0
    %183 = vmatpush1.xpose.msra.mxu0 0.0
    %184 = vmatprep.subr.mxu0 0.0
    %185 = vmatpush1.xpose.msra.mxu0 0.0
    %186 = vmatprep.subr.mxu0 0.0
    %187 = vmatpush1.xpose.msra.mxu0 0.0
    %188 = vmatprep.subr.mxu0 0.0
    %189 = vmatpush1.xpose.msra.mxu0 0.0
    %190 = vmatprep.subr.mxu0 0.0
    %191 = vmatpush1.xpose.msra.mxu0 0.0
    %192 = vmatprep.subr.mxu0 0.0
    %193 = vmatpush1.xpose.msra.mxu0 0.0
    %194 = vmatprep.subr.mxu0 0.0
    %195 = vmatpush1.xpose.msra.mxu0 0.0
    %196 = vmatprep.subr.mxu0 0.0
    %197 = vmatpush1.xpose.msra.mxu0 0.0
    %198 = vmatprep.subr.mxu0 0.0
    %199 = vmatpush1.xpose.msra.mxu0 0.0
    %200 = vmatprep.subr.mxu0 0.0
    %201 = vmatpush1.xpose.msra.mxu0 0.0
    %202 = vmatprep.subr.mxu0 0.0
    %203 = vmatpush1.xpose.msra.mxu0 0.0
    %204 = vmatprep.subr.mxu0 0.0
    %205 = vmatpush1.xpose.msra.mxu0 0.0
    %206 = vmatprep.subr.mxu0 0.0
    %207 = vmatpush1.xpose.msra.mxu0 0.0
    %208 = vmatprep.subr.mxu0 0.0
    %209 = vmatpush1.xpose.msra.mxu0 0.0
    %210 = vmatprep.subr.mxu0 0.0
    %211 = vmatpush1.xpose.msra.mxu0 0.0
    %212 = vmatprep.subr.mxu0 0.0
    %213 = vmatpush1.xpose.msra.mxu0 0.0
    %214 = vmatprep.subr.mxu0 0.0
    %215 = vmatpush1.xpose.msra.mxu0 0.0
    %216 = vmatprep.subr.mxu0 0.0
    %217 = vmatpush1.xpose.msra.mxu0 0.0
    %218 = vmatprep.subr.mxu0 0.0
    %219 = vmatpush1.xpose.msra.mxu0 0.0
    %220 = vmatprep.subr.mxu0 0.0
    %221 = vmatpush1.xpose.msra.mxu0 0.0
    %222 = vmatprep.subr.mxu0 0.0
    %223 = vmatpush1.xpose.msra.mxu0 0.0
    %224 = vmatprep.subr.mxu0 0.0
    %225 = vmatpush1.xpose.msra.mxu0 0.0
    %226 = vmatprep.subr.mxu0 0.0
    %227 = vmatpush1.xpose.msra.mxu0 0.0
    %228 = vmatprep.mubr.f32.mxu0 0.0
    %229 = vmatmul.mubr.f32.gmra.mrb[0].mxu0 %v159
    %v230 = vpop.f32.mrb[0].mxu0
    %v231 = vadd.f32 0.0, %v230
    %v232 = vpop.f32.mrb[0].mxu0
    %233 = vdwg.mxu0
    %v234 = vmul.f32 %v79, 0.17677669
    %v235 = vmul.f32 %v80, 0.17677669
    %v238 = vlaneseq
    %v239 = vshrl.u32 %v238, 7
    %v240 = vsub.s32 0, %v239
    %v241 = vrot.slane %v234, %v240
    %v242 = vlaneseq
    %v243 = vshrl.u32 %v242, 7
    %v244 = vsub.s32 0, %v243
    %v245 = vrot.slane %v235, %v244
    %v248 = vmul.f32 %v155, %v241
    %v249 = vmul.f32 %v231, %v245
    %vm250 = vcmask 64512
    %v251 = vsel %vm250, %v248, -inf
    %252 = vmax.xlane.f32.xlu0 %v251
    %v253 = vpop.xlane.xlu0 %252
    %v254 = vsel %vm250, %v249, -inf
    %255 = vmax.xlane.f32.xlu0 %v254
    %v256 = vpop.xlane.xlu0 %255
    %v257 = vsub.f32 %v248, %v253
    %v258 = vsub.f32 %v249, %v256
    %v259 = vmul.f32 %v257, 1.442695
    %v260 = vpow.pop %v259
    %v261 = vmul.f32 %v258, 1.442695
    %v262 = vpow.pop %v261
    %v265 = vlaneseq
    %v266 = vshrl.u32 %v265, 7
    %v267 = vsub.s32 0, %v266
    %v268 = vrot.slane %v79, %v267
    %v269 = vlaneseq
    %v270 = vshrl.u32 %v269, 7
    %v271 = vsub.s32 0, %v270
    %v272 = vrot.slane %v80, %v271
    %v275 = vmul.f32 %v260, %v268
    %v276 = vmul.f32 %v262, %v272
    %v277 = vsel %vm250, %v260, 0.0
    %278 = vadd.xlane.f32.xlu0 %v277
    %v279 = vpop.xlane.xlu0 %278
    %v280 = vsel %vm250, %v262, 0.0
    %281 = vadd.xlane.f32.xlu0 %v280
    %v282 = vpop.xlane.xlu0 %281
    %v283 = vsel %vm250, %v275, 0.0
    %284 = vadd.xlane.f32.xlu0 %v283
    %v285 = vpop.xlane.xlu0 %284
    %v286 = vsel %vm250, %v276, 0.0
    %287 = vadd.xlane.f32.xlu0 %v286
    %v288 = vpop.xlane.xlu0 %287
    %v289 = vmul.f32 %v279, 1e-13
    %v290 = vmul.f32 %v282, 1e-13
    %v291 = vadd.f32 %v285, %v289
    %v292 = vadd.f32 %v288, %v290
    %v293 = vrcp.pop %v291
    %v294 = vrcp.pop %v292
    %v295 = vmul.f32 %v275, %v293
    %v296 = vmul.f32 %v276, %v294
    %v298 = vsel %vm250, %v295, 0
    %300 = vmatprep.subr.mxu0 0.0
    %301 = vmatpush1.msra.mxu0 %v75
    %302 = vmatprep.subr.mxu0 0.0
    %303 = vmatpush1.msra.mxu0 0.0
    %304 = vmatprep.subr.mxu0 0.0
    %305 = vmatpush1.msra.mxu0 0.0
    %306 = vmatprep.subr.mxu0 0.0
    %307 = vmatpush1.msra.mxu0 0.0
    %308 = vmatprep.subr.mxu0 0.0
    %309 = vmatpush1.msra.mxu0 0.0
    %310 = vmatprep.subr.mxu0 0.0
    %311 = vmatpush1.msra.mxu0 0.0
    %312 = vmatprep.subr.mxu0 0.0
    %313 = vmatpush1.msra.mxu0 0.0
    %314 = vmatprep.subr.mxu0 0.0
    %315 = vmatpush1.msra.mxu0 0.0
    %316 = vmatprep.subr.mxu0 0.0
    %317 = vmatpush1.msra.mxu0 0.0
    %318 = vmatprep.subr.mxu0 0.0
    %319 = vmatpush1.msra.mxu0 0.0
    %320 = vmatprep.subr.mxu0 0.0
    %321 = vmatpush1.msra.mxu0 0.0
    %322 = vmatprep.subr.mxu0 0.0
    %323 = vmatpush1.msra.mxu0 0.0
    %324 = vmatprep.subr.mxu0 0.0
    %325 = vmatpush1.msra.mxu0 0.0
    %326 = vmatprep.subr.mxu0 0.0
    %327 = vmatpush1.msra.mxu0 0.0
    %328 = vmatprep.subr.mxu0 0.0
    %329 = vmatpush1.msra.mxu0 0.0
    %330 = vmatprep.subr.mxu0 0.0
    %331 = vmatpush1.msra.mxu0 0.0
    %332 = vmatprep.subr.mxu0 0.0
    %333 = vmatpush1.msra.mxu0 0.0
    %334 = vmatprep.subr.mxu0 0.0
    %335 = vmatpush1.msra.mxu0 0.0
    %336 = vmatprep.subr.mxu0 0.0
    %337 = vmatpush1.msra.mxu0 0.0
    %338 = vmatprep.subr.mxu0 0.0
    %339 = vmatpush1.msra.mxu0 0.0
    %340 = vmatprep.subr.mxu0 0.0
    %341 = vmatpush1.msra.mxu0 0.0
    %342 = vmatprep.subr.mxu0 0.0
    %343 = vmatpush1.msra.mxu0 0.0
    %344 = vmatprep.subr.mxu0 0.0
    %345 = vmatpush1.msra.mxu0 0.0
    %346 = vmatprep.subr.mxu0 0.0
    %347 = vmatpush1.msra.mxu0 0.0
    %348 = vmatprep.subr.mxu0 0.0
    %349 = vmatpush1.msra.mxu0 0.0
    %350 = vmatprep.subr.mxu0 0.0
    %351 = vmatpush1.msra.mxu0 0.0
    %352 = vmatprep.subr.mxu0 0.0
    %353 = vmatpush1.msra.mxu0 0.0
    %354 = vmatprep.subr.mxu0 0.0
    %355 = vmatpush1.msra.mxu0 0.0
    %356 = vmatprep.subr.mxu0 0.0
    %357 = vmatpush1.msra.mxu0 0.0
    %358 = vmatprep.subr.mxu0 0.0
    %359 = vmatpush1.msra.mxu0 0.0
    %360 = vmatprep.subr.mxu0 0.0
    %361 = vmatpush1.msra.mxu0 0.0
    %362 = vmatprep.subr.mxu0 0.0
    %363 = vmatpush1.msra.mxu0 0.0
    %364 = vmatprep.mubr.f32.mxu0 0.0
    %365 = vmatmul.mubr.f32.gmra.mrb[0].mxu0 %v298
    %v366 = vpop.f32.mrb[0].mxu0
    %v367 = vadd.f32 0.0, %v366
    %v368 = vpop.f32.mrb[0].mxu0
    %369 = vdwg.mxu0
    %v371 = vsel %vm250, %v296, 0
    %373 = vmatprep.subr.mxu0 0.0
    %374 = vmatpush1.msra.mxu0 %v76
    %375 = vmatprep.subr.mxu0 0.0
    %376 = vmatpush1.msra.mxu0 0.0
    %377 = vmatprep.subr.mxu0 0.0
    %378 = vmatpush1.msra.mxu0 0.0
    %379 = vmatprep.subr.mxu0 0.0
    %380 = vmatpush1.msra.mxu0 0.0
    %381 = vmatprep.subr.mxu0 0.0
    %382 = vmatpush1.msra.mxu0 0.0
    %383 = vmatprep.subr.mxu0 0.0
    %384 = vmatpush1.msra.mxu0 0.0
    %385 = vmatprep.subr.mxu0 0.0
    %386 = vmatpush1.msra.mxu0 0.0
    %387 = vmatprep.subr.mxu0 0.0
    %388 = vmatpush1.msra.mxu0 0.0
    %389 = vmatprep.subr.mxu0 0.0
    %390 = vmatpush1.msra.mxu0 0.0
    %391 = vmatprep.subr.mxu0 0.0
    %392 = vmatpush1.msra.mxu0 0.0
    %393 = vmatprep.subr.mxu0 0.0
    %394 = vmatpush1.msra.mxu0 0.0
    %395 = vmatprep.subr.mxu0 0.0
    %396 = vmatpush1.msra.mxu0 0.0
    %397 = vmatprep.subr.mxu0 0.0
    %398 = vmatpush1.msra.mxu0 0.0
    %399 = vmatprep.subr.mxu0 0.0
    %400 = vmatpush1.msra.mxu0 0.0
    %401 = vmatprep.subr.mxu0 0.0
    %402 = vmatpush1.msra.mxu0 0.0
    %403 = vmatprep.subr.mxu0 0.0
    %404 = vmatpush1.msra.mxu0 0.0
    %405 = vmatprep.subr.mxu0 0.0
    %406 = vmatpush1.msra.mxu0 0.0
    %407 = vmatprep.subr.mxu0 0.0
    %408 = vmatpush1.msra.mxu0 0.0
    %409 = vmatprep.subr.mxu0 0.0
    %410 = vmatpush1.msra.mxu0 0.0
    %411 = vmatprep.subr.mxu0 0.0
    %412 = vmatpush1.msra.mxu0 0.0
    %413 = vmatprep.subr.mxu0 0.0
    %414 = vmatpush1.msra.mxu0 0.0
    %415 = vmatprep.subr.mxu0 0.0
    %416 = vmatpush1.msra.mxu0 0.0
    %417 = vmatprep.subr.mxu0 0.0
    %418 = vmatpush1.msra.mxu0 0.0
    %419 = vmatprep.subr.mxu0 0.0
    %420 = vmatpush1.msra.mxu0 0.0
    %421 = vmatprep.subr.mxu0 0.0
    %422 = vmatpush1.msra.mxu0 0.0
    %423 = vmatprep.subr.mxu0 0.0
    %424 = vmatpush1.msra.mxu0 0.0
    %425 = vmatprep.subr.mxu0 0.0
    %426 = vmatpush1.msra.mxu0 0.0
    %427 = vmatprep.subr.mxu0 0.0
    %428 = vmatpush1.msra.mxu0 0.0
    %429 = vmatprep.subr.mxu0 0.0
    %430 = vmatpush1.msra.mxu0 0.0
    %431 = vmatprep.subr.mxu0 0.0
    %432 = vmatpush1.msra.mxu0 0.0
    %433 = vmatprep.subr.mxu0 0.0
    %434 = vmatpush1.msra.mxu0 0.0
    %435 = vmatprep.subr.mxu0 0.0
    %436 = vmatpush1.msra.mxu0 0.0
    %437 = vmatprep.mubr.f32.mxu0 0.0
    %438 = vmatmul.mubr.f32.gmra.mrb[0].mxu0 %v371
    %v439 = vpop.f32.mrb[0].mxu0
    %v440 = vadd.f32 0.0, %v439
    %v441 = vpop.f32.mrb[0].mxu0
    %442 = vdwg.mxu0
    %444 = vset.pattern.permute.xlu0 0
    %445 = vperm.xlu0 %444, %v77
    %v446 = vpop.permute.xlu0 %445
    %449 = vset.pattern.permute.xlu0 0
    %450 = vperm.xlu0 %449, %v78
    %v451 = vpop.permute.xlu0 %450
    %v453 = vmul.f32 %v367, %v446
    %v454 = vmul.f32 %v440, %v451
    %455 = vst.msk [vmem:[#allocation10] sm:$0xff] %vm81, %v453
    %456 = vst.msk [vmem:[#allocation10 + $0x8] sm:$0xff] %vm81, %v454
    // Predicated region
    $region34: #{tpu_custom_call.1} parent=1 // pred_check
      _
    $region35: #{tpu_custom_call.1} parent=1 // pred_check_branch
      %458 = sbr.rel (0) target = $region37
    $region36: #{tpu_custom_call.1} parent=1 // pred_region
      %s460 = ssub.s32 256, 256
      %461 = vsyncadd [#allocation4], %s460
      %s462 = sshll.u32 [#allocation10], 4
      %s463 = int_to_ptr.vmem [resolvable:$true] %s462
      %468 = dma.vmem_to_hbm [thread:$0]  %s463, 256, %s4, [#allocation4], 128, 128, 8
    $region37: #{tpu_custom_call.1} parent=1 // pred_fallthru
      _
    // Predicated region
    $region38: #{tpu_custom_call.1} parent=1 // pred_check
      _
    $region39: #{tpu_custom_call.1} parent=1 // pred_check_branch
      %470 = sbr.rel (0) target = $region41
    $region40: #{tpu_custom_call.1} parent=1 // pred_region
      %471 = dma.done [#allocation4], 256
    $region41: #{tpu_custom_call.1} parent=1 // pred_fallthru
      _
    %472 = vsyncpa [#allocation3], 1
    %473 = vsyncpa [#allocation6], 1
    %474 = vsyncpa [#allocation9], 1
    %475 = vsyncpa [#allocation4], 1

</llo_original>
